<compile_context>
chip_gen: v7x
topology: tpu7x:2x2x1
jax: 0.10.0
libtpu: 0.0.40
codegen_flags: <defaults>
</compile_context>

<pallas_src>
import math

import jax
import jax.numpy as jnp
from jax.experimental import pallas as pl
from jax.experimental.pallas import tpu as pltpu

D_MODEL = 20
MAX_SEQ_LENGTH = 100


def make_positional_encoding(d_model: int, max_seq_length: int) -> jnp.ndarray:
    """Deterministic sinusoidal table, shape (max_seq_length, d_model), float32.

    Matches the PyTorch module: pe[:, 0::2] = sin, pe[:, 1::2] = cos.
    (Like the PyTorch reference, assumes even d_model; d_model=20 here.)
    """
    position = jnp.arange(max_seq_length, dtype=jnp.float32)[:, None]            # (L, 1)
    div_term = jnp.exp(
        jnp.arange(0, d_model, 2, dtype=jnp.float32) * -(math.log(10000.0) / d_model)
    )                                                                             # (D/2,)
    angles = position * div_term                                                  # (L, D/2)
    pe = jnp.zeros((max_seq_length, d_model), dtype=jnp.float32)
    pe = pe.at[:, 0::2].set(jnp.sin(angles))
    pe = pe.at[:, 1::2].set(jnp.cos(angles)[:, : d_model // 2])
    return pe


def _pe_add_kernel(x_ref, pe_ref, o_ref):
    # x_ref: (TB, TN) batch-row tile; pe_ref: (1, TN) shared slab.
    # Sublane broadcast of pe over the TB rows is handled by jnp broadcasting;
    # the whole body is a single full-tile VPU add.
    o_ref[...] = x_ref[...] + pe_ref[...]


def positional_encoding_forward(x: jnp.ndarray, pe: jnp.ndarray) -> jnp.ndarray:
    """x: (B, S, D), pe: (max_seq_length, D). Returns x + pe[None, :S, :]."""
    B, S, D = x.shape
    N = S * D
    itemsize = jnp.dtype(x.dtype).itemsize

    # --- wrapper-side layout plumbing (bitcast reshapes only; no padding) ---
    x_flat = x.reshape(B, N)                                  # contiguous, free
    pe_flat = pe[:S, :].astype(x.dtype).reshape(1, N)         # tiny

    # Sublane packing factor: 8 rows for 32-bit, 16 for 16-bit, 32 for 8-bit.
    sublane = 8 * (4 // itemsize) if itemsize in (1, 2, 4) else 8

    # --- tile sizing against an ~8 MiB per-buffer budget ---
    TILE_BUDGET = 8 * 1024 * 1024
    row_bytes = N * itemsize
    rows_min = min(B, sublane)

    if rows_min * row_bytes > TILE_BUDGET:
        # A minimal sublane-aligned group of rows already overflows the budget:
        # also tile the flattened (S*D) axis in lane-aligned (x128) chunks so
        # double-buffered VMEM stays bounded (matters on v7x's 64 MiB VMEM/TC).
        tb = rows_min
        tn = max(128, ((TILE_BUDGET // (tb * itemsize)) // 128) * 128)
    else:
        tn = N                                   # full trailing dim -> no (8,128) issue
        tb_budget = max(1, TILE_BUDGET // row_bytes)
        # Cap at ceil(B/2) so big batches give >=2 parallel steps (v7x megacore).
        tb = min(tb_budget, max(1, pl.cdiv(B, 2)))
        if tb >= B:
            tb = B                               # single block covers the batch
        else:
            tb = max(sublane, (tb // sublane) * sublane)
            if tb >= B:
                tb = B

    grid = (pl.cdiv(B, tb), pl.cdiv(N, tn))

    out_flat = pl.pallas_call(
        _pe_add_kernel,
        out_shape=jax.ShapeDtypeStruct((B, N), x.dtype),
        grid_spec=pltpu.PrefetchScalarGridSpec(
            num_scalar_prefetch=0,
            grid=grid,
            in_specs=[
                pl.BlockSpec((tb, tn), lambda i, j: (i, j)),
                pl.BlockSpec((1, tn), lambda i, j: (0, j)),
            ],
            out_specs=pl.BlockSpec((tb, tn), lambda i, j: (i, j)),
        ),
        compiler_params=pltpu.CompilerParams(
            # Both axes are fully independent -> shard across v7x's 2 TCs.
            dimension_semantics=("parallel", "parallel"),
            # 8 MiB tiles x 2 buffers x (in + out) ~= 32-34 MiB; raise above the
            # 16/32 MiB scoped defaults while staying under v7x's 64 MiB VMEM.
            vmem_limit_bytes=48 * 1024 * 1024,
        ),
        cost_estimate=pl.CostEstimate(
            flops=B * N,
            transcendentals=0,
            bytes_accessed=(2 * B * N + N) * itemsize,
        ),
    )(x_flat, pe_flat)

    return out_flat.reshape(B, S, D)


if __name__ == "__main__":
    key = jax.random.PRNGKey(0)
    B, S, D = 2, 8, D_MODEL

    x = jax.random.normal(key, (B, S, D), dtype=jnp.float32)
    pe = make_positional_encoding(D_MODEL, MAX_SEQ_LENGTH)

    # Reference (pure JAX) — same semantics as the PyTorch forward.
    ref = x + pe[None, :S, :]

    out = positional_encoding_forward(x, pe)
    out = jax.block_until_ready(out)

    assert out.shape == (B, S, D)
    assert jnp.allclose(out, ref, atol=1e-6, rtol=1e-6)

    print("KERNEL_OK")
</pallas_src>

<mosaic_0001>
module attributes {stable_mosaic.version = 11 : i64} {
  func.func @_pe_add_kernel(%arg0: i32, %arg1: i32, %arg2: memref<2x160xf32, #tpu.memory_space<vmem>>, %arg3: memref<1x160xf32, #tpu.memory_space<vmem>>, %arg4: memref<2x160xf32, #tpu.memory_space<vmem>>) attributes {dimension_semantics = [#tpu.dimension_semantics<parallel>, #tpu.dimension_semantics<parallel>], iteration_bounds = array<i64: 1, 1>, scalar_prefetch = 0 : i64, scratch_operands = 0 : i64, tpu.core_type = #tpu.core_type<tc>, window_params = [{transform_indices = @transform_0, window_bounds = array<i64: 2, 160>}, {transform_indices = @transform_1, window_bounds = array<i64: 1, 160>}, {transform_indices = @transform_2, window_bounds = array<i64: 2, 160>}]} {
    %c0 = arith.constant 0 : index
    %c0_0 = arith.constant 0 : index
    %0 = vector.load %arg2[%c0, %c0_0] : memref<2x160xf32, #tpu.memory_space<vmem>>, vector<2x160xf32>
    %c0_1 = arith.constant 0 : index
    %c0_2 = arith.constant 0 : index
    %1 = vector.load %arg3[%c0_1, %c0_2] : memref<1x160xf32, #tpu.memory_space<vmem>>, vector<1x160xf32>
    %2 = vector.broadcast %1 : vector<1x160xf32> to vector<2x160xf32>
    %3 = arith.addf %0, %2 : vector<2x160xf32>
    %c0_3 = arith.constant 0 : index
    %c0_4 = arith.constant 0 : index
    %4 = vector.load %arg4[%c0_3, %c0_4] : memref<2x160xf32, #tpu.memory_space<vmem>>, vector<2x160xf32>
    tpu.vector_store %arg4[%c0_3, %c0_4], %3 {strides = array<i32>} : memref<2x160xf32, #tpu.memory_space<vmem>>, vector<2x160xf32>,
    return
  }
  func.func @transform_0(%arg0: i32, %arg1: i32) -> (i32, i32) {
    %c0_i32 = arith.constant 0 : i32
    return %arg0, %arg1 : i32, i32
  }
  func.func @transform_1(%arg0: i32, %arg1: i32) -> (i32, i32) {
    %c0_i32 = arith.constant 0 : i32
    %c0_i32_0 = arith.constant 0 : i32
    return %c0_i32, %arg1 : i32, i32
  }
  func.func @transform_2(%arg0: i32, %arg1: i32) -> (i32, i32) {
    %c0_i32 = arith.constant 0 : i32
    return %arg0, %arg1 : i32, i32
  }
}

</mosaic_0001>

<llo_original>
// kernel: tpu_custom_call.1
$region0: #{tpu_custom_call.1}
  #allocation0 [shape = 'u32[]', space=smem, size = 0x4, offset = 0x4, fixed_abs, tag = 'smem constant byte address 0x4 - core index']
  #allocation1 [shape = 'u32[144,128]{1,0:T(1,128)}', space=vmem, size = 0x12000, scoped, tag = 'internal scratch']
  %s0 = inlined_call_operand.hbm [shape: f32[2,160], index: 0, kind: input, shape index: {}]
  %s1 = inlined_call_operand.vmem [shape: f32[1,160], index: 1, kind: input, shape index: {}]
  %s2 = inlined_call_operand.hbm [shape: f32[2,160], index: 2, kind: output, shape index: {}]
  %s3 = sld [smem:[#allocation0]]
  $region22: #{tpu_custom_call.1} parent=0
    _
  %s5 = ssub.s32 1, %s3
  %s6 = scalar_select 0, %s5, %s3
  $region1: #{tpu_custom_call.1} parent=0
    #allocation2 [shape = 'u8[2048]{0}', space=vmem, size = 0x800, scoped, tag = 'input window, operand 0, single buffered']
    #allocation3 [shape = 's32[1]{0}', space=sflag, size = 0x4, scoped, tag = 'scoped memory for tpu_custom_call.1']
    #allocation4 [shape = 's32[1]{0}', space=sflag, size = 0x4, scoped, tag = 'scoped memory for tpu_custom_call.1']
    #allocation5 [shape = 'u8[2048]{0}', space=vmem, size = 0x800, scoped, tag = 'output window, operand 0, single buffered']
    %7 = vsyncpa [#allocation3], 0
    %8 = vsyncpa [#allocation4], 0
    // Predicated region
    $region2: #{tpu_custom_call.1} parent=1 // pred_check
      _
    $region3: #{tpu_custom_call.1} parent=1 // pred_check_branch
      %10 = sbr.rel (0) target = $region5
    $region4: #{tpu_custom_call.1} parent=1 // pred_region
      %s12 = ssub.s32 64, 64
      %13 = vsyncadd [#allocation3], %s12
      %s15 = sshll.u32 [#allocation2], 4
      %s16 = int_to_ptr.vmem [resolvable:$true] %s15
      %18 = dma.hbm_to_vmem [thread:$0]  %s0, 64, %s16, [#allocation3]
    $region5: #{tpu_custom_call.1} parent=1 // pred_fallthru
      _
    // Predicated region
    $region6: #{tpu_custom_call.1} parent=1 // pred_check
      _
    $region7: #{tpu_custom_call.1} parent=1 // pred_check_branch
      %20 = sbr.rel (0) target = $region9
    $region8: #{tpu_custom_call.1} parent=1 // pred_region
      _
    $region9: #{tpu_custom_call.1} parent=1 // pred_fallthru
      _
    // Predicated region
    $region10: #{tpu_custom_call.1} parent=1 // pred_check
      _
    $region11: #{tpu_custom_call.1} parent=1 // pred_check_branch
      %22 = sbr.rel (0) target = $region13
    $region12: #{tpu_custom_call.1} parent=1 // pred_region
      %23 = dma.done [#allocation3], 64
    $region13: #{tpu_custom_call.1} parent=1 // pred_fallthru
      _
    %v24 = vld [vmem:[#allocation2] sm:$0xf]
    %v25 = vld [vmem:[%s1] sm:$0x3]
    %v27 = vlaneseq
    %v28 = vshrl.u32 %v27, 7
    %v29 = vsub.s32 0, %v28
    %v30 = vrot.slane %v25, %v29
    %v31 = vlaneseq
    %v32 = vshrl.u32 %v31, 7
    %v33 = vsub.s32 1, %v32
    %v34 = vrot.slane %v25, %v33
    %v35 = vcombine.low %v30, %v34
    %v37 = vunpack.c.l.s4 1983009808
    %v38 = vunpack.c.0.s8 %v37
    %v39 = vlaneseq
    %v40 = vshrl.u32 %v39, 7
    %v41 = vsub.s32 %v38, %v40
    %v42 = vrot.slane %v35, %v41
    %v44 = vadd.f32 %v24, %v42
    %vm45 = vcmask 1041408
    %vm46 = vcmask 257026
    %vm47 = vmor %vm46, %vm45
    %48 = vst.msk [vmem:[#allocation5] sm:$0xf] %vm47, %v44
    // Predicated region
    $region14: #{tpu_custom_call.1} parent=1 // pred_check
      _
    $region15: #{tpu_custom_call.1} parent=1 // pred_check_branch
      %50 = sbr.rel (0) target = $region17
    $region16: #{tpu_custom_call.1} parent=1 // pred_region
      %s52 = ssub.s32 64, 64
      %53 = vsyncadd [#allocation4], %s52
      %s55 = sshll.u32 [#allocation5], 4
      %s56 = int_to_ptr.vmem [resolvable:$true] %s55
      %58 = dma.vmem_to_hbm [thread:$0]  %s56, 64, %s2, [#allocation4]
    $region17: #{tpu_custom_call.1} parent=1 // pred_fallthru
      _
    // Predicated region
    $region18: #{tpu_custom_call.1} parent=1 // pred_check
      _
    $region19: #{tpu_custom_call.1} parent=1 // pred_check_branch
      %60 = sbr.rel (0) target = $region21
    $region20: #{tpu_custom_call.1} parent=1 // pred_region
      %61 = dma.done [#allocation4], 64
    $region21: #{tpu_custom_call.1} parent=1 // pred_fallthru
      _
    %62 = vsyncpa [#allocation3], 1
    %63 = vsyncpa [#allocation4], 1

</llo_original>
